<compile_context>
chip_gen: v7x
topology: tpu7x:2x2x1
jax: 0.10.0
libtpu: 0.0.40
codegen_flags: <defaults>
</compile_context>

<pallas_src>
import jax
import jax.numpy as jnp
from jax.experimental import pallas as pl
from jax.experimental.pallas import tpu as pltpu

# config values (synthetic, deterministic) — mirrors config['lower'/'upper']
LOWER = -5.0
UPPER = 5.0

_MiB = 1024 * 1024


def _vmem_capacity_bytes():
    """Physical VMEM per core (128 MiB on v5e/v6e, 64 MiB on v7x)."""
    try:
        return int(pltpu.get_tpu_info().vmem_capacity_bytes)
    except Exception:
        return 64 * _MiB  # conservative fallback sized for v7x


def _largest_tile(n, cap, align):
    """Largest divisor of n that is a multiple of `align` and <= cap (or None)."""
    best = None
    d = align
    cap = min(n, cap)
    while d <= cap:
        if n % d == 0:
            best = d
        d += align
    return best


def _choose_tiles(B, D, itemsize, input_budget):
    """Pick (tb, td): multi-MiB blocks (3 inputs x 2 pipeline buffers must fit
    `input_budget`) with an even batch grid extent so both v7x TCs get work."""
    max_block_elems = (input_budget // (3 * 2)) // itemsize  # per input block

    # Feature tile: prefer the full feature axis (single reduction step, no
    # accumulator); otherwise the largest 128-aligned divisor leaving >= 8 rows.
    if D * 8 <= max_block_elems:
        td = D
    else:
        td = _largest_tile(D, max_block_elems // 8, 128)
        if td is None:
            # Ragged D with no 128-multiple divisor: forced full-row blocks
            # (last block dim must be 128-divisible or the full extent).
            td = D

    # Batch tile: bytes-targeted — no artificial row cap. Per-grid-step overhead
    # is ~0.35 us, so we want each step to move multi-MiB blocks and sit at the
    # HBM roofline on every generation.
    tb_cap = max(8, max_block_elems // max(td, 1))
    tb = _largest_tile(B, tb_cap, 8)
    if tb is None:
        tb = B  # ragged / tiny batch: single full-batch block

    # Megacore balance: prefer an even number (>= 2) of batch grid steps so the
    # "parallel" batch axis splits evenly across v7x's two TensorCores.
    if B >= 16:
        steps = B // tb
        if steps == 1 or (steps % 2 == 1 and steps <= 7):
            if tb % 16 == 0:
                tb //= 2
            elif steps == 1:
                half = _largest_tile(B, B // 2, 8)
                if half is not None:
                    tb = half

    return tb, td


def _abs_sum_kernel_direct(x_ref, xopt_ref, coef_ref, out_ref):
    # Single reduction step (td == D): no scratch, no init/finalize.
    # Compute in f32 regardless of the input dtype (v5e VPU has no bf16 path).
    x = x_ref[...].astype(jnp.float32)
    xo = xopt_ref[...].astype(jnp.float32)
    c = coef_ref[...].astype(jnp.float32)
    out_ref[...] = jnp.sum(jnp.abs(x - xo) * c, axis=1,
                           keepdims=True).astype(out_ref.dtype)


def _abs_sum_kernel_acc(x_ref, xopt_ref, coef_ref, out_ref, acc_ref):
    # Tiled reduction: lane-dense (tb, 128) accumulator; per-step work is pure
    # VALU adds over full vregs, and the cross-lane (XLU) reduce + masked output
    # store happen only once, on the last reduction step.
    k = pl.program_id(1)  # feature (reduction) axis — last grid dim, "arbitrary"

    @pl.when(k == 0)
    def _():
        acc_ref[...] = jnp.zeros_like(acc_ref)

    x = x_ref[...].astype(jnp.float32)
    xo = xopt_ref[...].astype(jnp.float32)
    c = coef_ref[...].astype(jnp.float32)
    sd = jnp.abs(x - xo) * c                      # (tb, td) f32
    td = sd.shape[1]
    partial = acc_ref[...]
    for j in range(td // 128):                    # static, lane-aligned slices
        partial = partial + sd[:, j * 128:(j + 1) * 128]
    acc_ref[...] = partial

    @pl.when(k == pl.num_programs(1) - 1)
    def _():
        out_ref[...] = jnp.sum(acc_ref[...], axis=1,
                               keepdims=True).astype(out_ref.dtype)


def abs_forward(x, x_opt, coefs1, *, tb=None, td=None):
    B, D = x.shape
    assert x_opt.shape == (B, D) and coefs1.shape == (B, D)

    itemsize = jnp.dtype(x.dtype).itemsize
    vmem_cap = _vmem_capacity_bytes()
    # ~36 MiB of double-buffered input blocks on v7x (64 MiB VMEM),
    # ~72 MiB on v5e/v6e (128 MiB VMEM).
    input_budget = (vmem_cap * 9) // 16
    # Explicit scoped-VMEM ceiling (~50 MiB on v7x, ~100 MiB on v5e/v6e); the
    # explicit raise matters most on v5e whose default scoped VMEM is 16 MiB.
    limit_cap = min((vmem_cap * 25) // 32, 100 * _MiB)

    auto_tb, auto_td = _choose_tiles(B, D, itemsize, input_budget)
    tb = auto_tb if tb is None else tb
    td = auto_td if td is None else td
    assert B % tb == 0, "batch must be divisible by the batch tile"
    assert D % td == 0, "dimension must be divisible by the feature tile"

    # double-buffered input blocks + lane-padded output buffers + f32 accumulator
    est = 2 * 3 * tb * td * itemsize + 3 * tb * 128 * 4
    vmem_limit = min(limit_cap, max(int(1.5 * est), 16 * _MiB))

    # Note: output writeback is only B*4 bytes total (negligible next to the
    # three input streams), so the module's natural (B, 1) output layout is kept.
    if td == D:
        # Single reduction step: direct write, 1-D grid, no scratch round-trip.
        return pl.pallas_call(
            _abs_sum_kernel_direct,
            out_shape=jax.ShapeDtypeStruct((B, 1), x.dtype),
            grid=(B // tb,),
            in_specs=[
                pl.BlockSpec((tb, td), lambda i: (i, 0)),
                pl.BlockSpec((tb, td), lambda i: (i, 0)),
                pl.BlockSpec((tb, td), lambda i: (i, 0)),
            ],
            out_specs=pl.BlockSpec((tb, 1), lambda i: (i, 0)),
            compiler_params=pltpu.CompilerParams(
                dimension_semantics=("parallel",),
                vmem_limit_bytes=vmem_limit,
            ),
        )(x, x_opt, coefs1)

    assert td % 128 == 0, "tiled reduction requires a 128-aligned feature tile"
    return pl.pallas_call(
        _abs_sum_kernel_acc,
        out_shape=jax.ShapeDtypeStruct((B, 1), x.dtype),
        grid=(B // tb, D // td),
        in_specs=[
            pl.BlockSpec((tb, td), lambda i, k: (i, k)),
            pl.BlockSpec((tb, td), lambda i, k: (i, k)),
            pl.BlockSpec((tb, td), lambda i, k: (i, k)),
        ],
        out_specs=pl.BlockSpec((tb, 1), lambda i, k: (i, 0)),
        scratch_shapes=[pltpu.VMEM((tb, 128), jnp.float32)],
        compiler_params=pltpu.CompilerParams(
            dimension_semantics=("parallel", "arbitrary"),
            vmem_limit_bytes=vmem_limit,
        ),
    )(x, x_opt, coefs1)


def _ref(x, x_opt, coefs1):
    return jnp.sum(jnp.abs(x - x_opt) * coefs1, axis=1, keepdims=True)


def _make_inputs(key, batch, dim):
    k_xopt, k_coef, k_x = jax.random.split(key, 3)
    # deterministic "parameters" (mirrors Abs.generate)
    x_opt = jax.random.uniform(k_xopt, (batch, dim), jnp.float32) * (UPPER - LOWER) + LOWER
    coefs1 = jax.random.uniform(k_coef, (batch, dim), jnp.float32) * 10.0
    x = jax.random.uniform(k_x, (batch, dim), jnp.float32) * (UPPER - LOWER) + LOWER
    return x, x_opt, coefs1


if __name__ == "__main__":
    key = jax.random.PRNGKey(0)
    k1, k2, k3 = jax.random.split(key, 3)

    # case 1: module-sized example, auto tiling (single grid step, direct path)
    x, x_opt, coefs1 = _make_inputs(k1, 8, 128)
    out = jax.block_until_ready(abs_forward(x, x_opt, coefs1))
    ref = _ref(x, x_opt, coefs1)
    assert out.shape == (8, 1)
    assert jnp.allclose(out, ref, rtol=1e-5, atol=1e-5)

    # case 2: explicitly exercise the tiled reduction (lane-dense accumulator)
    x, x_opt, coefs1 = _make_inputs(k2, 64, 512)
    out = jax.block_until_ready(abs_forward(x, x_opt, coefs1, tb=32, td=256))
    ref = _ref(x, x_opt, coefs1)
    assert out.shape == (64, 1)
    assert jnp.allclose(out, ref, rtol=1e-5, atol=1e-4)

    # case 3: auto tiling with megacore-friendly even batch split (grid >= 2)
    x, x_opt, coefs1 = _make_inputs(k3, 256, 384)
    out = jax.block_until_ready(abs_forward(x, x_opt, coefs1))
    ref = _ref(x, x_opt, coefs1)
    assert out.shape == (256, 1)
    assert jnp.allclose(out, ref, rtol=1e-5, atol=1e-4)

    print("KERNEL_OK")
</pallas_src>

<mosaic_0001>
module attributes {stable_mosaic.version = 11 : i64} {
  func.func @_abs_sum_kernel_direct(%arg0: i32, %arg1: memref<8x128xf32, #tpu.memory_space<vmem>>, %arg2: memref<8x128xf32, #tpu.memory_space<vmem>>, %arg3: memref<8x128xf32, #tpu.memory_space<vmem>>, %arg4: memref<8x1xf32, #tpu.memory_space<vmem>>) attributes {dimension_semantics = [#tpu.dimension_semantics<parallel>], iteration_bounds = array<i64: 1>, scalar_prefetch = 0 : i64, scratch_operands = 0 : i64, tpu.core_type = #tpu.core_type<tc>, window_params = [{transform_indices = @transform_0, window_bounds = array<i64: 8, 128>}, {transform_indices = @transform_1, window_bounds = array<i64: 8, 128>}, {transform_indices = @transform_2, window_bounds = array<i64: 8, 128>}, {transform_indices = @transform_3, window_bounds = array<i64: 8, 1>}]} {
    %c0 = arith.constant 0 : index
    %c0_0 = arith.constant 0 : index
    %0 = vector.load %arg1[%c0, %c0_0] : memref<8x128xf32, #tpu.memory_space<vmem>>, vector<8x128xf32>
    %c0_1 = arith.constant 0 : index
    %c0_2 = arith.constant 0 : index
    %1 = vector.load %arg2[%c0_1, %c0_2] : memref<8x128xf32, #tpu.memory_space<vmem>>, vector<8x128xf32>
    %c0_3 = arith.constant 0 : index
    %c0_4 = arith.constant 0 : index
    %2 = vector.load %arg3[%c0_3, %c0_4] : memref<8x128xf32, #tpu.memory_space<vmem>>, vector<8x128xf32>
    %3 = arith.subf %0, %1 : vector<8x128xf32>
    %4 = math.absf %3 : vector<8x128xf32>
    %5 = arith.mulf %4, %2 : vector<8x128xf32>
    %cst = arith.constant dense<0.000000e+00> : vector<8xf32>
    %6 = vector.multi_reduction <add>, %5, %cst [1] : vector<8x128xf32> to vector<8xf32>
    %7 = vector.shape_cast %6 : vector<8xf32> to vector<8x1xf32>
    %c0_5 = arith.constant 0 : index
    %c0_6 = arith.constant 0 : index
    %8 = vector.load %arg4[%c0_5, %c0_6] : memref<8x1xf32, #tpu.memory_space<vmem>>, vector<8x1xf32>
    tpu.vector_store %arg4[%c0_5, %c0_6], %7 {strides = array<i32>} : memref<8x1xf32, #tpu.memory_space<vmem>>, vector<8x1xf32>,
    return
  }
  func.func @transform_0(%arg0: i32) -> (i32, i32) {
    %c0_i32 = arith.constant 0 : i32
    %c0_i32_0 = arith.constant 0 : i32
    return %arg0, %c0_i32 : i32, i32
  }
  func.func @transform_1(%arg0: i32) -> (i32, i32) {
    %c0_i32 = arith.constant 0 : i32
    %c0_i32_0 = arith.constant 0 : i32
    return %arg0, %c0_i32 : i32, i32
  }
  func.func @transform_2(%arg0: i32) -> (i32, i32) {
    %c0_i32 = arith.constant 0 : i32
    %c0_i32_0 = arith.constant 0 : i32
    return %arg0, %c0_i32 : i32, i32
  }
  func.func @transform_3(%arg0: i32) -> (i32, i32) {
    %c0_i32 = arith.constant 0 : i32
    %c0_i32_0 = arith.constant 0 : i32
    return %arg0, %c0_i32 : i32, i32
  }
}

</mosaic_0001>

<llo_original>
// kernel: tpu_custom_call.1
$region0: #{tpu_custom_call.1}
  #allocation0 [shape = 'u32[]', space=smem, size = 0x4, offset = 0x4, fixed_abs, tag = 'smem constant byte address 0x4 - core index']
  #allocation1 [shape = 'u32[144,128]{1,0:T(1,128)}', space=vmem, size = 0x12000, scoped, tag = 'internal scratch']
  %s0 = inlined_call_operand.hbm [shape: f32[8,128], index: 0, kind: input, shape index: {}]
  %s1 = inlined_call_operand.hbm [shape: f32[8,128], index: 1, kind: input, shape index: {}]
  %s2 = inlined_call_operand.hbm [shape: f32[8,128], index: 2, kind: input, shape index: {}]
  %s3 = inlined_call_operand.vmem [shape: f32[8,1], index: 3, kind: output, shape index: {}]
  %s4 = sld [smem:[#allocation0]]
  $region34: #{tpu_custom_call.1} parent=0
    _
  %s6 = ssub.s32 1, %s4
  %s7 = scalar_select 0, %s6, %s4
  $region1: #{tpu_custom_call.1} parent=0
    #allocation2 [shape = 'u8[4096]{0}', space=vmem, size = 0x1000, scoped, tag = 'input window, operand 0, single buffered']
    #allocation3 [shape = 's32[1]{0}', space=sflag, size = 0x4, scoped, tag = 'scoped memory for tpu_custom_call.1']
    #allocation4 [shape = 'u8[4096]{0}', space=vmem, size = 0x1000, scoped, tag = 'input window, operand 1, single buffered']
    #allocation5 [shape = 's32[1]{0}', space=sflag, size = 0x4, scoped, tag = 'scoped memory for tpu_custom_call.1']
    #allocation6 [shape = 'u8[4096]{0}', space=vmem, size = 0x1000, scoped, tag = 'input window, operand 2, single buffered']
    %8 = vsyncpa [#allocation3], 0
    %9 = vsyncpa [#allocation5], 0
    // Predicated region
    $region2: #{tpu_custom_call.1} parent=1 // pred_check
      _
    $region3: #{tpu_custom_call.1} parent=1 // pred_check_branch
      %11 = sbr.rel (0) target = $region5
    $region4: #{tpu_custom_call.1} parent=1 // pred_region
      %s13 = ssub.s32 128, 128
      %14 = vsyncadd [#allocation3], %s13
      %s16 = sshll.u32 [#allocation2], 4
      %s17 = int_to_ptr.vmem [resolvable:$true] %s16
      %19 = dma.hbm_to_vmem [thread:$0]  %s0, 128, %s17, [#allocation3]
    $region5: #{tpu_custom_call.1} parent=1 // pred_fallthru
      _
    // Predicated region
    $region6: #{tpu_custom_call.1} parent=1 // pred_check
      _
    $region7: #{tpu_custom_call.1} parent=1 // pred_check_branch
      %21 = sbr.rel (0) target = $region9
    $region8: #{tpu_custom_call.1} parent=1 // pred_region
      %s23 = ssub.s32 128, 128
      %24 = vsyncadd [#allocation5], %s23
      %s26 = sshll.u32 [#allocation4], 4
      %s27 = int_to_ptr.vmem [resolvable:$true] %s26
      %29 = dma.hbm_to_vmem [thread:$0]  %s1, 128, %s27, [#allocation5]
    $region9: #{tpu_custom_call.1} parent=1 // pred_fallthru
      _
    // Predicated region
    $region10: #{tpu_custom_call.1} parent=1 // pred_check
      _
    $region11: #{tpu_custom_call.1} parent=1 // pred_check_branch
      %31 = sbr.rel (0) target = $region13
    $region12: #{tpu_custom_call.1} parent=1 // pred_region
      %s33 = ssub.s32 128, 128
      %34 = vsyncadd [#allocation5], %s33
      %s36 = sshll.u32 [#allocation6], 4
      %s37 = int_to_ptr.vmem [resolvable:$true] %s36
      %39 = dma.hbm_to_vmem [thread:$0]  %s2, 128, %s37, [#allocation5]
    $region13: #{tpu_custom_call.1} parent=1 // pred_fallthru
      _
    // Predicated region
    $region14: #{tpu_custom_call.1} parent=1 // pred_check
      _
    $region15: #{tpu_custom_call.1} parent=1 // pred_check_branch
      %41 = sbr.rel (0) target = $region17
    $region16: #{tpu_custom_call.1} parent=1 // pred_region
      %42 = dma.done [#allocation3], 128
    $region17: #{tpu_custom_call.1} parent=1 // pred_fallthru
      _
    // Predicated region
    $region18: #{tpu_custom_call.1} parent=1 // pred_check
      _
    $region19: #{tpu_custom_call.1} parent=1 // pred_check_branch
      %44 = sbr.rel (0) target = $region21
    $region20: #{tpu_custom_call.1} parent=1 // pred_region
      %45 = dma.done [#allocation5], 128
    $region21: #{tpu_custom_call.1} parent=1 // pred_fallthru
      _
    // Predicated region
    $region22: #{tpu_custom_call.1} parent=1 // pred_check
      _
    $region23: #{tpu_custom_call.1} parent=1 // pred_check_branch
      %47 = sbr.rel (0) target = $region25
    $region24: #{tpu_custom_call.1} parent=1 // pred_region
      %48 = dma.done [#allocation5], 128
    $region25: #{tpu_custom_call.1} parent=1 // pred_fallthru
      _
    %v49 = vld [vmem:[#allocation2] sm:$0xff]
    %v50 = vld [vmem:[#allocation4] sm:$0xff]
    %v51 = vld [vmem:[#allocation6] sm:$0xff]
    %v52 = vsub.f32 %v49, %v50
    %v53 = vand.u32 2147483647, %v52
    %v54 = vmul.f32 %v53, %v51
    %55 = vadd.xlane.f32.xlu0 %v54
    %v56 = vpop.xlane.xlu0 %55
    %vm57 = vcmask 7168
    %58 = vst.msk [vmem:[%s3] sm:$0xff] %vm57, %v56
    // Predicated region
    $region26: #{tpu_custom_call.1} parent=1 // pred_check
      _
    $region27: #{tpu_custom_call.1} parent=1 // pred_check_branch
      %60 = sbr.rel (0) target = $region29
    $region28: #{tpu_custom_call.1} parent=1 // pred_region
      _
    $region29: #{tpu_custom_call.1} parent=1 // pred_fallthru
      _
    // Predicated region
    $region30: #{tpu_custom_call.1} parent=1 // pred_check
      _
    $region31: #{tpu_custom_call.1} parent=1 // pred_check_branch
      %62 = sbr.rel (0) target = $region33
    $region32: #{tpu_custom_call.1} parent=1 // pred_region
      _
    $region33: #{tpu_custom_call.1} parent=1 // pred_fallthru
      _
    %63 = vsyncpa [#allocation3], 1
    %64 = vsyncpa [#allocation5], 1

</llo_original>
